<compile_context>
chip_gen: v6e
topology: v6e:2x2x1
jax: 0.10.0
libtpu: 0.0.40
codegen_flags: <defaults>
</compile_context>

<pallas_src>
import jax
import jax.numpy as jnp
from jax.experimental import pallas as pl
from jax.experimental.pallas import tpu as pltpu

N_OPERATIONS = 3   # linear, identity, zero
N_ACTIVATIONS = 3  # relu, tanh, sigmoid
N_MIXED = N_OPERATIONS * N_ACTIVATIONS

LANE = 128
SUBLANE = 8


def _round_up(v, m):
    return (v + m - 1) // m * m


def _mixedop_kernel(w_ref, x_ref, wt_ref, b_ref, o_ref):
    """w_ref : (N_MIXED,) f32 in SMEM (scalar-prefetched architecture weights)
       x_ref : (TILE_B, Dp) f32 VMEM tile of the (padded) input
       wt_ref: (Dp, Dp) bf16 VMEM    (Linear weight, pre-transposed, resident)
       b_ref : (1, Dp)  f32 VMEM     (Linear bias, resident)
       o_ref : (TILE_B, Dp) f32 VMEM output tile
    """
    x = x_ref[...]                                            # f32

    # Linear candidate: bf16 MXU matmul with f32 accumulation, bias in f32.
    lin = jnp.dot(x.astype(wt_ref.dtype), wt_ref[...],
                  preferred_element_type=jnp.float32) + b_ref[...]

    relu = lambda v: jnp.maximum(v, 0.0)
    # sigmoid(v) == 0.5*tanh(0.5*v) + 0.5  : one EUP op + cheap VPU ops.
    sigm = lambda v: 0.5 * jnp.tanh(0.5 * v) + 0.5

    # Zero-op candidates (k = 6, 7, 8): relu(0)=0, tanh(0)=0, sigmoid(0)=0.5
    # -> they collapse to the broadcast constant 0.5 * w[8].
    acc = jnp.full(x.shape, 0.5 * w_ref[8], dtype=jnp.float32)

    # Linear-op candidates (k = 0, 1, 2).
    acc = acc + w_ref[0] * relu(lin) + w_ref[1] * jnp.tanh(lin) + w_ref[2] * sigm(lin)
    # Identity-op candidates (k = 3, 4, 5).
    acc = acc + w_ref[3] * relu(x) + w_ref[4] * jnp.tanh(x) + w_ref[5] * sigm(x)

    o_ref[...] = acc.astype(o_ref.dtype)


def mixed_op(x, weights, lin_w, lin_b, *, tile_b=256, mxu_dtype=jnp.bfloat16):
    """x: (B, D) f32, weights: (N_MIXED,) f32,
       lin_w: (D, D) f32 (PyTorch Linear convention, out x in), lin_b: (D,) f32."""
    B, D = x.shape

    # Lane-dense padding: features -> multiple of 128, batch -> multiple of the
    # (8-aligned) batch tile.  Padded rows/cols are sliced off at the end.
    Dp = _round_up(D, LANE)
    Bp = _round_up(B, SUBLANE)
    tb = min(tile_b, Bp)
    Bp = _round_up(Bp, tb)

    xp = jnp.pad(x, ((0, Bp - B), (0, Dp - D)))
    wt = jnp.pad(lin_w.T, ((0, Dp - D), (0, Dp - D))).astype(mxu_dtype)   # x @ W^T
    bp = jnp.pad(lin_b, (0, Dp - D)).reshape(1, Dp).astype(jnp.float32)

    # VMEM budget: resident weight + bias + double-buffered x/out tiles (+margin).
    itemsize = jnp.dtype(mxu_dtype).itemsize
    need = Dp * Dp * itemsize + Dp * 4 + 2 * 2 * tb * Dp * 4 + (4 << 20)
    vmem_limit = int(min(max(need, 32 << 20), 96 << 20))

    grid = (Bp // tb,)
    out = pl.pallas_call(
        _mixedop_kernel,
        out_shape=jax.ShapeDtypeStruct((Bp, Dp), jnp.float32),
        grid_spec=pltpu.PrefetchScalarGridSpec(
            num_scalar_prefetch=1,                       # weights -> SMEM
            grid=grid,
            in_specs=[
                pl.BlockSpec((tb, Dp), lambda i, w: (i, 0)),   # x tile
                pl.BlockSpec((Dp, Dp), lambda i, w: (0, 0)),   # W^T (resident)
                pl.BlockSpec((1, Dp), lambda i, w: (0, 0)),    # bias (resident)
            ],
            out_specs=pl.BlockSpec((tb, Dp), lambda i, w: (i, 0)),
        ),
        compiler_params=pltpu.CompilerParams(
            dimension_semantics=("parallel",),
            vmem_limit_bytes=vmem_limit,
        ),
    )(weights, xp, wt, bp)

    return out[:B, :D]


def _reference_f32(x, weights, lin_w, lin_b):
    """Exact semantics of the original module (f32 matmul, jax.nn.sigmoid)."""
    lin = x @ lin_w.T + lin_b
    ident = x
    zero = jnp.zeros_like(x)
    acts = (lambda v: jnp.maximum(v, 0.0), jnp.tanh, jax.nn.sigmoid)
    outs = []
    for op_out in (lin, ident, zero):
        for act in acts:
            outs.append(act(op_out))
    return sum(w * o for w, o in zip(weights, outs))


def _reference_bf16(x, weights, lin_w, lin_b):
    """Same, but with the bf16 MXU matmul the kernel uses (tight comparison)."""
    lin = jnp.dot(x.astype(jnp.bfloat16), lin_w.T.astype(jnp.bfloat16),
                  preferred_element_type=jnp.float32) + lin_b
    ident = x
    zero = jnp.zeros_like(x)
    acts = (lambda v: jnp.maximum(v, 0.0), jnp.tanh, jax.nn.sigmoid)
    outs = []
    for op_out in (lin, ident, zero):
        for act in acts:
            outs.append(act(op_out))
    return sum(w * o for w, o in zip(weights, outs))


if __name__ == "__main__":
    key = jax.random.PRNGKey(0)
    k_x, k_w, k_b, k_a = jax.random.split(key, 4)

    B, D = 2, 32   # batch=2, hidden size=32
    x = jax.random.normal(k_x, (B, D), dtype=jnp.float32)

    # deterministic parameter init for the single Linear(size, size) candidate
    lin_w = jax.random.normal(k_w, (D, D), dtype=jnp.float32) * (1.0 / jnp.sqrt(D))
    lin_b = jax.random.normal(k_b, (D,), dtype=jnp.float32) * 0.01

    # architecture weights (softmaxed alphas, as in DARTS)
    alphas = jax.random.normal(k_a, (N_MIXED,), dtype=jnp.float32)
    weights = jax.nn.softmax(alphas)

    out = mixed_op(x, weights, lin_w, lin_b)
    out = jax.block_until_ready(out)
    assert out.shape == (B, D)

    # Tight check vs. a reference that uses the same bf16 MXU matmul.
    ref_bf16 = _reference_bf16(x, weights, lin_w, lin_b)
    assert jnp.allclose(out, ref_bf16, atol=1e-3, rtol=1e-3), "mismatch vs bf16 reference"

    # Loose check vs. the exact f32 module semantics (bf16 matmul ~1e-3 error).
    ref_f32 = _reference_f32(x, weights, lin_w, lin_b)
    assert jnp.allclose(out, ref_f32, atol=5e-2, rtol=5e-2), "mismatch vs f32 reference"

    print("KERNEL_OK")
</pallas_src>

<mosaic_0001>
module attributes {stable_mosaic.version = 11 : i64} {
  func.func @_mixedop_kernel(%arg0: i32, %arg1: memref<9xf32, #tpu.memory_space<smem>>, %arg2: memref<8x128xf32, #tpu.memory_space<vmem>>, %arg3: memref<128x128xbf16, #tpu.memory_space<vmem>>, %arg4: memref<1x128xf32, #tpu.memory_space<vmem>>, %arg5: memref<8x128xf32, #tpu.memory_space<vmem>>) attributes {dimension_semantics = [#tpu.dimension_semantics<parallel>], iteration_bounds = array<i64: 1>, scalar_prefetch = 1 : i64, scratch_operands = 0 : i64, tpu.core_type = #tpu.core_type<tc>, window_params = [{transform_indices = @transform_0, window_bounds = array<i64: 8, 128>}, {pipeline_mode = #tpu.pipeline_mode<synchronous>, transform_indices = @transform_1, window_bounds = array<i64: 128, 128>}, {pipeline_mode = #tpu.pipeline_mode<synchronous>, transform_indices = @transform_2, window_bounds = array<i64: 1, 128>}, {transform_indices = @transform_3, window_bounds = array<i64: 8, 128>}]} {
    %c0 = arith.constant 0 : index
    %c0_0 = arith.constant 0 : index
    %0 = vector.load %arg2[%c0, %c0_0] : memref<8x128xf32, #tpu.memory_space<vmem>>, vector<8x128xf32>
    %1 = arith.truncf %0 : vector<8x128xf32> to vector<8x128xbf16>
    %c0_1 = arith.constant 0 : index
    %c0_2 = arith.constant 0 : index
    %2 = vector.load %arg3[%c0_1, %c0_2] : memref<128x128xbf16, #tpu.memory_space<vmem>>, vector<128x128xbf16>
    %cst = arith.constant dense<0.000000e+00> : vector<8x128xf32>
    %3 = tpu.matmul %1, %2, %cst {dimension_numbers = #tpu.dot_dimension_numbers<[1], [0], [0], [1], [0, 0, 1, 1], [], []>} : vector<8x128xbf16>, vector<128x128xbf16>, vector<8x128xf32> -> vector<8x128xf32>
    %c0_3 = arith.constant 0 : index
    %c0_4 = arith.constant 0 : index
    %4 = vector.load %arg4[%c0_3, %c0_4] : memref<1x128xf32, #tpu.memory_space<vmem>>, vector<1x128xf32>
    %5 = vector.broadcast %4 : vector<1x128xf32> to vector<8x128xf32>
    %6 = arith.addf %3, %5 : vector<8x128xf32>
    %c8 = arith.constant 8 : index
    %7 = memref.load %arg1[%c8] : memref<9xf32, #tpu.memory_space<smem>>
    %cst_5 = arith.constant 5.000000e-01 : f32
    %8 = arith.mulf %cst_5, %7 : f32
    %9 = vector.broadcast %8 : f32 to vector<8x128xf32>
    %c0_6 = arith.constant 0 : index
    %10 = memref.load %arg1[%c0_6] : memref<9xf32, #tpu.memory_space<smem>>
    %cst_7 = arith.constant 0.000000e+00 : f32
    %11 = vector.broadcast %cst_7 : f32 to vector<8x128xf32>
    %12 = arith.maximumf %6, %11 : vector<8x128xf32>
    %13 = vector.broadcast %10 : f32 to vector<8x128xf32>
    %14 = arith.mulf %13, %12 : vector<8x128xf32>
    %15 = arith.addf %9, %14 : vector<8x128xf32>
    %c1 = arith.constant 1 : index
    %16 = memref.load %arg1[%c1] : memref<9xf32, #tpu.memory_space<smem>>
    %17 = math.tanh %6 : vector<8x128xf32>
    %18 = vector.broadcast %16 : f32 to vector<8x128xf32>
    %19 = arith.mulf %18, %17 : vector<8x128xf32>
    %20 = arith.addf %15, %19 : vector<8x128xf32>
    %c2 = arith.constant 2 : index
    %21 = memref.load %arg1[%c2] : memref<9xf32, #tpu.memory_space<smem>>
    %cst_8 = arith.constant 5.000000e-01 : f32
    %22 = vector.broadcast %cst_8 : f32 to vector<8x128xf32>
    %23 = arith.mulf %22, %6 : vector<8x128xf32>
    %24 = math.tanh %23 : vector<8x128xf32>
    %cst_9 = arith.constant 5.000000e-01 : f32
    %25 = vector.broadcast %cst_9 : f32 to vector<8x128xf32>
    %26 = arith.mulf %25, %24 : vector<8x128xf32>
    %cst_10 = arith.constant 5.000000e-01 : f32
    %27 = vector.broadcast %cst_10 : f32 to vector<8x128xf32>
    %28 = arith.addf %26, %27 : vector<8x128xf32>
    %29 = vector.broadcast %21 : f32 to vector<8x128xf32>
    %30 = arith.mulf %29, %28 : vector<8x128xf32>
    %31 = arith.addf %20, %30 : vector<8x128xf32>
    %c3 = arith.constant 3 : index
    %32 = memref.load %arg1[%c3] : memref<9xf32, #tpu.memory_space<smem>>
    %cst_11 = arith.constant 0.000000e+00 : f32
    %33 = vector.broadcast %cst_11 : f32 to vector<8x128xf32>
    %34 = arith.maximumf %0, %33 : vector<8x128xf32>
    %35 = vector.broadcast %32 : f32 to vector<8x128xf32>
    %36 = arith.mulf %35, %34 : vector<8x128xf32>
    %37 = arith.addf %31, %36 : vector<8x128xf32>
    %c4 = arith.constant 4 : index
    %38 = memref.load %arg1[%c4] : memref<9xf32, #tpu.memory_space<smem>>
    %39 = math.tanh %0 : vector<8x128xf32>
    %40 = vector.broadcast %38 : f32 to vector<8x128xf32>
    %41 = arith.mulf %40, %39 : vector<8x128xf32>
    %42 = arith.addf %37, %41 : vector<8x128xf32>
    %c5 = arith.constant 5 : index
    %43 = memref.load %arg1[%c5] : memref<9xf32, #tpu.memory_space<smem>>
    %cst_12 = arith.constant 5.000000e-01 : f32
    %44 = vector.broadcast %cst_12 : f32 to vector<8x128xf32>
    %45 = arith.mulf %44, %0 : vector<8x128xf32>
    %46 = math.tanh %45 : vector<8x128xf32>
    %cst_13 = arith.constant 5.000000e-01 : f32
    %47 = vector.broadcast %cst_13 : f32 to vector<8x128xf32>
    %48 = arith.mulf %47, %46 : vector<8x128xf32>
    %cst_14 = arith.constant 5.000000e-01 : f32
    %49 = vector.broadcast %cst_14 : f32 to vector<8x128xf32>
    %50 = arith.addf %48, %49 : vector<8x128xf32>
    %51 = vector.broadcast %43 : f32 to vector<8x128xf32>
    %52 = arith.mulf %51, %50 : vector<8x128xf32>
    %53 = arith.addf %42, %52 : vector<8x128xf32>
    %c0_15 = arith.constant 0 : index
    %c0_16 = arith.constant 0 : index
    %54 = vector.load %arg5[%c0_15, %c0_16] : memref<8x128xf32, #tpu.memory_space<vmem>>, vector<8x128xf32>
    tpu.vector_store %arg5[%c0_15, %c0_16], %53 {strides = array<i32>} : memref<8x128xf32, #tpu.memory_space<vmem>>, vector<8x128xf32>,
    return
  }
  func.func @transform_0(%arg0: i32, %arg1: memref<9xf32, #tpu.memory_space<smem>>) -> (i32, i32) {
    %c0_i32 = arith.constant 0 : i32
    %c0_i32_0 = arith.constant 0 : i32
    return %arg0, %c0_i32 : i32, i32
  }
  func.func @transform_1(%arg0: i32, %arg1: memref<9xf32, #tpu.memory_space<smem>>) -> (i32, i32) {
    %c0_i32 = arith.constant 0 : i32
    %c0_i32_0 = arith.constant 0 : i32
    %c0_i32_1 = arith.constant 0 : i32
    return %c0_i32, %c0_i32_0 : i32, i32
  }
  func.func @transform_2(%arg0: i32, %arg1: memref<9xf32, #tpu.memory_space<smem>>) -> (i32, i32) {
    %c0_i32 = arith.constant 0 : i32
    %c0_i32_0 = arith.constant 0 : i32
    %c0_i32_1 = arith.constant 0 : i32
    return %c0_i32, %c0_i32_0 : i32, i32
  }
  func.func @transform_3(%arg0: i32, %arg1: memref<9xf32, #tpu.memory_space<smem>>) -> (i32, i32) {
    %c0_i32 = arith.constant 0 : i32
    %c0_i32_0 = arith.constant 0 : i32
    return %arg0, %c0_i32 : i32, i32
  }
}

</mosaic_0001>

<llo_original>
// kernel: tpu_custom_call.1
$region0: #{tpu_custom_call.1}
  #allocation0 [shape = 'u32[]', space=smem, size = 0x4, offset = 0x4, fixed_abs, tag = 'smem constant byte address 0x4 - core index']
  #allocation1 [shape = 'u32[144,128]{1,0:T(1,128)}', space=vmem, size = 0x12000, scoped, tag = 'internal scratch']
  #allocation2 [shape = 's32[1]{0}', space=sflag, size = 0x4, scoped, tag = 'scoped memory for tpu_custom_call.1']
  #allocation3 [shape = 'u8[512]{0}', space=smem, size = 0x200, scoped, tag = 'prefetched SMEM operand 0']
  %s0 = inlined_call_operand.hbm [shape: f32[9], index: 0, kind: input, shape index: {}]
  %s1 = inlined_call_operand.hbm [shape: f32[8,128], index: 1, kind: input, shape index: {}]
  %s2 = inlined_call_operand.hbm [shape: bf16[128,128], index: 2, kind: input, shape index: {}]
  %s3 = inlined_call_operand.vmem [shape: f32[1,128], index: 3, kind: input, shape index: {}]
  %s4 = inlined_call_operand.hbm [shape: f32[8,128], index: 4, kind: output, shape index: {}]
  %s5 = sld [smem:[#allocation0]]
  $region30: #{tpu_custom_call.1} parent=0
    _
  %s7 = ssub.s32 1, %s5
  %s8 = scalar_select 0, %s7, %s5
  %10 = dma.hbm_to_smem %s0, 16, [#allocation3], [#allocation2]
  %11 = dma.done [#allocation2], 16
  %12 = sfence
  $region1: #{tpu_custom_call.1} parent=0
    #allocation4 [shape = 'u8[4096]{0}', space=vmem, size = 0x1000, scoped, tag = 'input window, operand 1, single buffered']
    #allocation5 [shape = 's32[1]{0}', space=sflag, size = 0x4, scoped, tag = 'scoped memory for tpu_custom_call.1']
    #allocation6 [shape = 's32[1]{0}', space=sflag, size = 0x4, scoped, tag = 'scoped memory for tpu_custom_call.1']
    #allocation7 [shape = 'u8[32768]{0}', space=vmem, size = 0x8000, scoped, tag = 'input window, operand 2, single buffered']
    #allocation8 [shape = 's32[1]{0}', space=sflag, size = 0x4, scoped, tag = 'scoped memory for tpu_custom_call.1']
    #allocation9 [shape = 'u8[4096]{0}', space=vmem, size = 0x1000, scoped, tag = 'output window, operand 0, single buffered']
    %13 = vsyncpa [#allocation5], 0
    %14 = vsyncpa [#allocation8], 0
    %15 = vsyncpa [#allocation6], 0
    // Predicated region
    $region2: #{tpu_custom_call.1} parent=1 // pred_check
      _
    $region3: #{tpu_custom_call.1} parent=1 // pred_check_branch
      %17 = sbr.rel (0) target = $region5
    $region4: #{tpu_custom_call.1} parent=1 // pred_region
      %s19 = ssub.s32 128, 128
      %20 = vsyncadd [#allocation5], %s19
      %s22 = sshll.u32 [#allocation4], 4
      %s23 = int_to_ptr.vmem [resolvable:$true] %s22
      %25 = dma.hbm_to_vmem [thread:$0]  %s1, 128, %s23, [#allocation5]
    $region5: #{tpu_custom_call.1} parent=1 // pred_fallthru
      _
    // Predicated region
    $region6: #{tpu_custom_call.1} parent=1 // pred_check
      _
    $region7: #{tpu_custom_call.1} parent=1 // pred_check_branch
      %27 = sbr.rel (0) target = $region9
    $region8: #{tpu_custom_call.1} parent=1 // pred_region
      %s29 = ssub.s32 1024, 1024
      %30 = vsyncadd [#allocation8], %s29
      %s31 = sshll.u32 [#allocation7], 4
      %s32 = int_to_ptr.vmem [resolvable:$true] %s31
      %37 = dma.hbm_to_vmem [thread:$0]  %s2, 1024, %s32, [#allocation8], 64, 64, 4
    $region9: #{tpu_custom_call.1} parent=1 // pred_fallthru
      _
    // Predicated region
    $region10: #{tpu_custom_call.1} parent=1 // pred_check
      _
    $region11: #{tpu_custom_call.1} parent=1 // pred_check_branch
      %39 = sbr.rel (0) target = $region13
    $region12: #{tpu_custom_call.1} parent=1 // pred_region
      _
    $region13: #{tpu_custom_call.1} parent=1 // pred_fallthru
      _
    // Predicated region
    $region14: #{tpu_custom_call.1} parent=1 // pred_check
      _
    $region15: #{tpu_custom_call.1} parent=1 // pred_check_branch
      %41 = sbr.rel (0) target = $region17
    $region16: #{tpu_custom_call.1} parent=1 // pred_region
      %42 = dma.done [#allocation5], 128
    $region17: #{tpu_custom_call.1} parent=1 // pred_fallthru
      _
    // Predicated region
    $region18: #{tpu_custom_call.1} parent=1 // pred_check
      _
    $region19: #{tpu_custom_call.1} parent=1 // pred_check_branch
      %44 = sbr.rel (0) target = $region21
    $region20: #{tpu_custom_call.1} parent=1 // pred_region
      %45 = dma.done [#allocation8], 1024
    $region21: #{tpu_custom_call.1} parent=1 // pred_fallthru
      _
    %v47 = vld [vmem:[#allocation4] sm:$0xff]
    %v48 = vpack.c.bf16 %v47, %v47
    %v49 = vld [vmem:[#allocation7] sm:$0xf]
    %v50 = vld [vmem:[#allocation7 + $0x4] sm:$0xf]
    %v51 = vld [vmem:[#allocation7 + $0x8] sm:$0xf]
    %v52 = vld [vmem:[#allocation7 + $0xc] sm:$0xf]
    %v53 = vld [vmem:[#allocation7 + $0x10] sm:$0xf]
    %v54 = vld [vmem:[#allocation7 + $0x14] sm:$0xf]
    %v55 = vld [vmem:[#allocation7 + $0x18] sm:$0xf]
    %v56 = vld [vmem:[#allocation7 + $0x1c] sm:$0xf]
    %v57 = vld [vmem:[#allocation7 + $0x20] sm:$0xf]
    %v58 = vld [vmem:[#allocation7 + $0x24] sm:$0xf]
    %v59 = vld [vmem:[#allocation7 + $0x28] sm:$0xf]
    %v60 = vld [vmem:[#allocation7 + $0x2c] sm:$0xf]
    %v61 = vld [vmem:[#allocation7 + $0x30] sm:$0xf]
    %v62 = vld [vmem:[#allocation7 + $0x34] sm:$0xf]
    %v63 = vld [vmem:[#allocation7 + $0x38] sm:$0xf]
    %v64 = vld [vmem:[#allocation7 + $0x3c] sm:$0xf]
    %v65 = vld [vmem:[%s3] sm:$0x1]
    %v67 = vlaneseq
    %v68 = vshrl.u32 %v67, 7
    %v69 = vsub.s32 0, %v68
    %v70 = vrot.slane %v65, %v69
    %v88 = vunpack.c.l.b16 %v49
    %v89 = vunpack.c.l.b16 %v50
    %v90 = vunpack.c.l.b16 %v51
    %v91 = vunpack.c.l.b16 %v52
    %v92 = vunpack.c.l.b16 %v53
    %v93 = vunpack.c.l.b16 %v54
    %v94 = vunpack.c.l.b16 %v55
    %v95 = vunpack.c.l.b16 %v56
    %v96 = vunpack.c.l.b16 %v57
    %v97 = vunpack.c.l.b16 %v58
    %v98 = vunpack.c.l.b16 %v59
    %v99 = vunpack.c.l.b16 %v60
    %v100 = vunpack.c.l.b16 %v61
    %v101 = vunpack.c.l.b16 %v62
    %v102 = vunpack.c.l.b16 %v63
    %v103 = vunpack.c.l.b16 %v64
    %v104 = vpack.c.b16 %v89, %v88
    %v105 = vpack.c.b16 %v91, %v90
    %v106 = vpack.c.b16 %v93, %v92
    %v107 = vpack.c.b16 %v95, %v94
    %v108 = vpack.c.b16 %v97, %v96
    %v109 = vpack.c.b16 %v99, %v98
    %v110 = vpack.c.b16 %v101, %v100
    %v111 = vpack.c.b16 %v103, %v102
    %120 = vmatprep.subr.bf16.mxu0 0
    %121 = vmatpush1.bf16.msra.mxu0 %v111
    %122 = vmatprep.subr.bf16.mxu0 0
    %123 = vmatpush1.bf16.msra.mxu0 %v110
    %124 = vmatprep.subr.bf16.mxu0 0
    %125 = vmatpush1.bf16.msra.mxu0 %v109
    %126 = vmatprep.subr.bf16.mxu0 0
    %127 = vmatpush1.bf16.msra.mxu0 %v108
    %128 = vmatprep.subr.bf16.mxu0 0
    %129 = vmatpush1.bf16.msra.mxu0 %v107
    %130 = vmatprep.subr.bf16.mxu0 0
    %131 = vmatpush1.bf16.msra.mxu0 %v106
    %132 = vmatprep.subr.bf16.mxu0 0
    %133 = vmatpush1.bf16.msra.mxu0 %v105
    %134 = vmatprep.subr.bf16.mxu0 0
    %135 = vmatpush1.bf16.msra.mxu0 %v104
    %136 = vmatprep.subr.bf16.mxu0 0
    %137 = vmatpush2.bf16.msra.mxu0 0
    %138 = vmatprep.subr.bf16.mxu0 0
    %139 = vmatpush2.bf16.msra.mxu0 0
    %140 = vmatprep.subr.bf16.mxu0 0
    %141 = vmatpush2.bf16.msra.mxu0 0
    %142 = vmatprep.subr.bf16.mxu0 0
    %143 = vmatpush2.bf16.msra.mxu0 0
    %144 = vmatprep.subr.bf16.mxu0 0
    %145 = vmatpush2.bf16.msra.mxu0 0
    %146 = vmatprep.subr.bf16.mxu0 0
    %147 = vmatpush2.bf16.msra.mxu0 0
    %148 = vmatprep.subr.bf16.mxu0 0
    %149 = vmatpush2.bf16.msra.mxu0 0
    %150 = vmatprep.subr.bf16.mxu0 0
    %151 = vmatpush2.bf16.msra.mxu0 0
    %152 = vmatprep.mubr.bf16.mxu0 0
    %153 = vmatmul.mubr.bf16.gmra.mxu0 %v48
    %v154 = vpop.f32.mrf.mxu0
    %v155 = vadd.f32 %v70, %v154
    %v156 = vpop.f32.mrf.mxu0
    %v157 = vpop.f32.mrf.mxu0
    %v158 = vpop.f32.mrf.mxu0
    %159 = vdwg.mxu0
    %s160 = sld [smem:[#allocation3 + $0x8]]
    %s161 = smul.f32 %s160, 0.5
    %v162 = vstv %s161
    %s163 = sld [smem:[#allocation3]]
    %v164 = vmax.f32 %v155, 0.0
    %v165 = vstv %s163
    %v166 = vmul.f32 %v165, %v164
    %v167 = vadd.f32 %v162, %v166
    %s168 = sld [smem:[#allocation3 + $0x1]]
    %v169 = vtanh.pop %v155
    %v170 = vstv %s168
    %v171 = vmul.f32 %v170, %v169
    %v172 = vadd.f32 %v167, %v171
    %s173 = sld [smem:[#allocation3 + $0x2]]
    %v174 = vmul.f32 %v155, 0.5
    %v175 = vtanh.pop %v174
    %v176 = vmul.f32 %v175, 0.5
    %v177 = vadd.f32 %v176, 0.5
    %v178 = vstv %s173
    %v179 = vmul.f32 %v178, %v177
    %v180 = vadd.f32 %v172, %v179
    %s181 = sld [smem:[#allocation3 + $0x3]]
    %v182 = vmax.f32 %v47, 0.0
    %v183 = vstv %s181
    %v184 = vmul.f32 %v183, %v182
    %v185 = vadd.f32 %v180, %v184
    %s186 = sld [smem:[#allocation3 + $0x4]]
    %v187 = vtanh.pop %v47
    %v188 = vstv %s186
    %v189 = vmul.f32 %v188, %v187
    %v190 = vadd.f32 %v185, %v189
    %s191 = sld [smem:[#allocation3 + $0x5]]
    %v192 = vmul.f32 %v47, 0.5
    %v193 = vtanh.pop %v192
    %v194 = vmul.f32 %v193, 0.5
    %v195 = vadd.f32 %v194, 0.5
    %v196 = vstv %s191
    %v197 = vmul.f32 %v196, %v195
    %v198 = vadd.f32 %v190, %v197
    %199 = vst [vmem:[#allocation9] sm:$0xff] %v198
    // Predicated region
    $region22: #{tpu_custom_call.1} parent=1 // pred_check
      _
    $region23: #{tpu_custom_call.1} parent=1 // pred_check_branch
      %201 = sbr.rel (0) target = $region25
    $region24: #{tpu_custom_call.1} parent=1 // pred_region
      %s203 = ssub.s32 128, 128
      %204 = vsyncadd [#allocation6], %s203
      %s206 = sshll.u32 [#allocation9], 4
      %s207 = int_to_ptr.vmem [resolvable:$true] %s206
      %209 = dma.vmem_to_hbm [thread:$0]  %s207, 128, %s4, [#allocation6]
    $region25: #{tpu_custom_call.1} parent=1 // pred_fallthru
      _
    // Predicated region
    $region26: #{tpu_custom_call.1} parent=1 // pred_check
      _
    $region27: #{tpu_custom_call.1} parent=1 // pred_check_branch
      %211 = sbr.rel (0) target = $region29
    $region28: #{tpu_custom_call.1} parent=1 // pred_region
      %212 = dma.done [#allocation6], 128
    $region29: #{tpu_custom_call.1} parent=1 // pred_fallthru
      _
    %213 = vsyncpa [#allocation5], 1
    %214 = vsyncpa [#allocation8], 1
    %215 = vsyncpa [#allocation6], 1

</llo_original>
